<compile_context>
chip_gen: v5e
topology: v5e:2x2
jax: 0.10.0
libtpu: 0.0.40
codegen_flags: <defaults>
</compile_context>

<pallas_src>
import math

import jax
import jax.numpy as jnp
from jax.experimental import pallas as pl
from jax.experimental.pallas import tpu as pltpu

NUM_HEADS = 2
D_MODEL = 32
SEQ_LEN = 8
BATCH = 2


def _make_mha_kernel(num_seqs, num_heads, seq_len, batch):
    """Single-invocation multi-head self-attention kernel.

    Ref layout (all refs fully VMEM-resident):
      seq refs  : num_seqs x (N*L, E_i)  batch-major 2-D activation chunks
      w_in_ref  : (3E, E)                nn.MultiheadAttention in_proj_weight (native)
      b_in_ref  : (1, 3E)                in_proj_bias
      w_out_ref : (E, E)                 out_proj.weight (native)
      b_out_ref : (1, E)                 out_proj.bias
      o_ref     : (N*L, E)               output (batch-major rows)
    """

    def kernel(*refs):
        seq_refs = refs[:num_seqs]
        w_in_ref, b_in_ref, w_out_ref, b_out_ref, o_ref = refs[num_seqs:]

        _, E = o_ref.shape
        L, N = seq_len, batch
        hd = E // num_heads
        scale = 1.0 / math.sqrt(hd)

        # Fused torch.cat(..., dim=2): lane-axis concat of the per-sequence chunks.
        x = jnp.concatenate([r[...].astype(jnp.float32) for r in seq_refs],
                            axis=-1)                                     # (N*L, E)

        # Single fused QKV projection for all batch rows: x @ W_in^T + b_in.
        # Last-dim/last-dim contraction => no wrapper-side weight transpose.
        qkv = jax.lax.dot_general(
            x, w_in_ref[...].astype(jnp.float32), (((1,), (1,)), ((), ())),
            preferred_element_type=jnp.float32)                          # (N*L, 3E)
        qkv = qkv + b_in_ref[...].astype(jnp.float32)                    # one broadcast add

        # Attention score scale applied once, in-kernel (cheap VALU filler).
        q_all = qkv[:, :E] * scale
        k_all = qkv[:, E:2 * E]
        v_all = qkv[:, 2 * E:]

        batch_blocks = []
        for n in range(N):                       # static, tiny batch loop
            r0, r1 = n * L, (n + 1) * L          # contiguous 8-sublane-aligned rows
            head_blocks = []
            for h in range(num_heads):           # static head loop
                c0, c1 = h * hd, (h + 1) * hd
                q_h = q_all[r0:r1, c0:c1]        # (L, hd)
                k_h = k_all[r0:r1, c0:c1]
                v_h = v_all[r0:r1, c0:c1]

                # scores = q_h @ k_h^T (contract last dims, no explicit transpose)
                s = jax.lax.dot_general(
                    q_h, k_h, (((1,), (1,)), ((), ())),
                    preferred_element_type=jnp.float32)                  # (L, L)
                s = s - jnp.max(s, axis=-1, keepdims=True)
                p = jnp.exp(s)
                d = jnp.sum(p, axis=-1, keepdims=True)
                # EUP vrcp + one Newton step: exact to ~2^-24 rel error.
                r = pl.reciprocal(d, approx=True)
                r = r * (2.0 - d * r)
                p = p * r

                pv = jnp.dot(p, v_h, preferred_element_type=jnp.float32)  # (L, hd)
                head_blocks.append(pv)
            # Lane-axis concat of heads -> (L, E)
            batch_blocks.append(jnp.concatenate(head_blocks, axis=-1))
        # Sublane-axis concat of batches -> (N*L, E)
        attn = jnp.concatenate(batch_blocks, axis=0)

        # Single fused output projection for all heads & batches: attn @ W_out^T + b_out.
        out = jax.lax.dot_general(
            attn, w_out_ref[...].astype(jnp.float32), (((1,), (1,)), ((), ())),
            preferred_element_type=jnp.float32)                          # (N*L, E)
        out = out + b_out_ref[...].astype(jnp.float32)
        o_ref[...] = out.astype(o_ref.dtype)

    return kernel


@jax.jit
def cross_attention(sequences, in_proj_w, in_proj_b, out_proj_w, out_proj_b):
    """Mirrors CrossAttentionModule.forward.

    sequences  : list of (L, N, E_i) arrays, sum(E_i) == d_model
    in_proj_w  : (3E, E)   nn.MultiheadAttention in_proj_weight (native orientation)
    in_proj_b  : (3E,)
    out_proj_w : (E, E)
    out_proj_b : (E,)
    returns    : (L, N, E)
    """
    L, N = sequences[0].shape[0], sequences[0].shape[1]
    dims = [s.shape[2] for s in sequences]
    E = sum(dims)

    # Cheap layout transform so the kernel sees contiguous batch-major 2-D rows.
    seqs2d = [s.transpose(1, 0, 2).reshape(N * L, d) for s, d in zip(sequences, dims)]

    b_in = in_proj_b.reshape(1, 3 * E)
    b_out = out_proj_b.reshape(1, E)

    kernel = _make_mha_kernel(len(sequences), NUM_HEADS, L, N)
    n_inputs = len(sequences) + 4

    # Single gridless invocation; total resident footprint ~30 KiB of VMEM.
    out2d = pl.pallas_call(
        kernel,
        out_shape=jax.ShapeDtypeStruct((N * L, E), sequences[0].dtype),
        in_specs=[pl.BlockSpec(memory_space=pltpu.MemorySpace.VMEM)] * n_inputs,
        out_specs=pl.BlockSpec(memory_space=pltpu.MemorySpace.VMEM),
    )(*seqs2d, in_proj_w, b_in, out_proj_w, b_out)

    # Back to PyTorch's (L, N, E) layout.
    return out2d.reshape(N, L, E).transpose(1, 0, 2)


def reference(sequences, in_proj_w, in_proj_b, out_proj_w, out_proj_b):
    """Pure-JAX reference matching nn.MultiheadAttention(d_model, num_heads)."""
    x = jnp.concatenate(sequences, axis=2)        # (L, N, E)
    L, N, E = x.shape
    hd = E // NUM_HEADS
    qkv = jnp.einsum("lne,fe->lnf", x, in_proj_w) + in_proj_b
    q, k, v = jnp.split(qkv, 3, axis=-1)
    qh = q.reshape(L, N, NUM_HEADS, hd).transpose(1, 2, 0, 3)
    kh = k.reshape(L, N, NUM_HEADS, hd).transpose(1, 2, 0, 3)
    vh = v.reshape(L, N, NUM_HEADS, hd).transpose(1, 2, 0, 3)
    scores = jnp.einsum("nhld,nhmd->nhlm", qh, kh) / jnp.sqrt(float(hd))
    p = jax.nn.softmax(scores, axis=-1)
    o = jnp.einsum("nhlm,nhmd->nhld", p, vh)
    o = o.transpose(2, 0, 1, 3).reshape(L, N, E)
    return jnp.einsum("lne,fe->lnf", o, out_proj_w) + out_proj_b


if __name__ == "__main__":
    key = jax.random.PRNGKey(0)
    k1, k2, k3, k4, k5, k6 = jax.random.split(key, 6)

    # Two sequences each carrying half the embedding dim; concat along dim=2 -> d_model.
    seq_a = jax.random.normal(k1, (SEQ_LEN, BATCH, D_MODEL // 2), jnp.float32)
    seq_b = jax.random.normal(k2, (SEQ_LEN, BATCH, D_MODEL // 2), jnp.float32)

    # Deterministic synthetic parameters matching nn.MultiheadAttention shapes.
    in_proj_w = 0.1 * jax.random.normal(k3, (3 * D_MODEL, D_MODEL), jnp.float32)
    in_proj_b = 0.1 * jax.random.normal(k4, (3 * D_MODEL,), jnp.float32)
    out_proj_w = 0.1 * jax.random.normal(k5, (D_MODEL, D_MODEL), jnp.float32)
    out_proj_b = 0.1 * jax.random.normal(k6, (D_MODEL,), jnp.float32)

    out = cross_attention([seq_a, seq_b], in_proj_w, in_proj_b, out_proj_w, out_proj_b)
    out = jax.block_until_ready(out)

    ref = reference([seq_a, seq_b], in_proj_w, in_proj_b, out_proj_w, out_proj_b)
    assert out.shape == (SEQ_LEN, BATCH, D_MODEL)
    assert jnp.allclose(out, ref, atol=1e-4, rtol=1e-4), "mismatch vs reference"

    print("KERNEL_OK")
</pallas_src>

<mosaic_0001>
module attributes {stable_mosaic.version = 11 : i64} {
  func.func @kernel(%arg0: memref<16x16xf32, #tpu.memory_space<vmem>>, %arg1: memref<16x16xf32, #tpu.memory_space<vmem>>, %arg2: memref<96x32xf32, #tpu.memory_space<vmem>>, %arg3: memref<1x96xf32, #tpu.memory_space<vmem>>, %arg4: memref<32x32xf32, #tpu.memory_space<vmem>>, %arg5: memref<1x32xf32, #tpu.memory_space<vmem>>, %arg6: memref<16x32xf32, #tpu.memory_space<vmem>>) attributes {dimension_semantics = [], scalar_prefetch = 0 : i64, scratch_operands = 0 : i64, tpu.core_type = #tpu.core_type<tc>} {
    %c0 = arith.constant 0 : index
    %c0_0 = arith.constant 0 : index
    %0 = vector.load %arg0[%c0, %c0_0] : memref<16x16xf32, #tpu.memory_space<vmem>>, vector<16x16xf32>
    %c0_1 = arith.constant 0 : index
    %c0_2 = arith.constant 0 : index
    %1 = vector.load %arg1[%c0_1, %c0_2] : memref<16x16xf32, #tpu.memory_space<vmem>>, vector<16x16xf32>
    %2 = tpu.concatenate %0, %1 in 1 : vector<16x16xf32>, vector<16x16xf32> -> vector<16x32xf32>
    %c0_3 = arith.constant 0 : index
    %c0_4 = arith.constant 0 : index
    %3 = vector.load %arg2[%c0_3, %c0_4] : memref<96x32xf32, #tpu.memory_space<vmem>>, vector<96x32xf32>
    %cst = arith.constant dense<0.000000e+00> : vector<16x96xf32>
    %4 = tpu.matmul %2, %3, %cst {dimension_numbers = #tpu.dot_dimension_numbers<[1], [1], [0], [0], [0, 0, 1, 0], [], []>} : vector<16x32xf32>, vector<96x32xf32>, vector<16x96xf32> -> vector<16x96xf32>
    %c0_5 = arith.constant 0 : index
    %c0_6 = arith.constant 0 : index
    %5 = vector.load %arg3[%c0_5, %c0_6] : memref<1x96xf32, #tpu.memory_space<vmem>>, vector<1x96xf32>
    %6 = vector.broadcast %5 : vector<1x96xf32> to vector<16x96xf32>
    %7 = arith.addf %4, %6 : vector<16x96xf32>
    %8 = vector.extract_strided_slice %7 {offsets = [0, 0], sizes = [16, 32], strides = [1, 1]} : vector<16x96xf32> to vector<16x32xf32>
    %cst_7 = arith.constant 2.500000e-01 : f32
    %9 = vector.broadcast %cst_7 : f32 to vector<16x32xf32>
    %10 = arith.mulf %8, %9 : vector<16x32xf32>
    %11 = vector.extract_strided_slice %7 {offsets = [0, 32], sizes = [16, 32], strides = [1, 1]} : vector<16x96xf32> to vector<16x32xf32>
    %12 = vector.extract_strided_slice %7 {offsets = [0, 64], sizes = [16, 32], strides = [1, 1]} : vector<16x96xf32> to vector<16x32xf32>
    %13 = vector.extract_strided_slice %10 {offsets = [0, 0], sizes = [8, 16], strides = [1, 1]} : vector<16x32xf32> to vector<8x16xf32>
    %14 = vector.extract_strided_slice %11 {offsets = [0, 0], sizes = [8, 16], strides = [1, 1]} : vector<16x32xf32> to vector<8x16xf32>
    %15 = vector.extract_strided_slice %12 {offsets = [0, 0], sizes = [8, 16], strides = [1, 1]} : vector<16x32xf32> to vector<8x16xf32>
    %cst_8 = arith.constant dense<0.000000e+00> : vector<8x8xf32>
    %16 = tpu.matmul %13, %14, %cst_8 {dimension_numbers = #tpu.dot_dimension_numbers<[1], [1], [0], [0], [0, 0, 1, 0], [], []>} : vector<8x16xf32>, vector<8x16xf32>, vector<8x8xf32> -> vector<8x8xf32>
    %cst_9 = arith.constant dense<0xFF800000> : vector<8xf32>
    %17 = vector.multi_reduction <maximumf>, %16, %cst_9 [1] : vector<8x8xf32> to vector<8xf32>
    %18 = vector.shape_cast %17 : vector<8xf32> to vector<8x1xf32>
    %19 = vector.broadcast %18 : vector<8x1xf32> to vector<8x8xf32>
    %20 = arith.subf %16, %19 : vector<8x8xf32>
    %21 = math.exp %20 : vector<8x8xf32>
    %cst_10 = arith.constant dense<0.000000e+00> : vector<8xf32>
    %22 = vector.multi_reduction <add>, %21, %cst_10 [1] : vector<8x8xf32> to vector<8xf32>
    %23 = vector.shape_cast %22 : vector<8xf32> to vector<8x1xf32>
    %24 = tpu.reciprocal %23 {approx = true} : vector<8x1xf32> -> vector<8x1xf32>
    %25 = arith.mulf %23, %24 : vector<8x1xf32>
    %cst_11 = arith.constant 2.000000e+00 : f32
    %26 = vector.broadcast %cst_11 : f32 to vector<8x1xf32>
    %27 = arith.subf %26, %25 : vector<8x1xf32>
    %28 = arith.mulf %24, %27 : vector<8x1xf32>
    %29 = vector.broadcast %28 : vector<8x1xf32> to vector<8x8xf32>
    %30 = arith.mulf %21, %29 : vector<8x8xf32>
    %cst_12 = arith.constant dense<0.000000e+00> : vector<8x16xf32>
    %31 = tpu.matmul %30, %15, %cst_12 {dimension_numbers = #tpu.dot_dimension_numbers<[1], [0], [0], [1], [0, 0, 1, 1], [], []>} : vector<8x8xf32>, vector<8x16xf32>, vector<8x16xf32> -> vector<8x16xf32>
    %32 = vector.extract_strided_slice %10 {offsets = [0, 16], sizes = [8, 16], strides = [1, 1]} : vector<16x32xf32> to vector<8x16xf32>
    %33 = vector.extract_strided_slice %11 {offsets = [0, 16], sizes = [8, 16], strides = [1, 1]} : vector<16x32xf32> to vector<8x16xf32>
    %34 = vector.extract_strided_slice %12 {offsets = [0, 16], sizes = [8, 16], strides = [1, 1]} : vector<16x32xf32> to vector<8x16xf32>
    %cst_13 = arith.constant dense<0.000000e+00> : vector<8x8xf32>
    %35 = tpu.matmul %32, %33, %cst_13 {dimension_numbers = #tpu.dot_dimension_numbers<[1], [1], [0], [0], [0, 0, 1, 0], [], []>} : vector<8x16xf32>, vector<8x16xf32>, vector<8x8xf32> -> vector<8x8xf32>
    %cst_14 = arith.constant dense<0xFF800000> : vector<8xf32>
    %36 = vector.multi_reduction <maximumf>, %35, %cst_14 [1] : vector<8x8xf32> to vector<8xf32>
    %37 = vector.shape_cast %36 : vector<8xf32> to vector<8x1xf32>
    %38 = vector.broadcast %37 : vector<8x1xf32> to vector<8x8xf32>
    %39 = arith.subf %35, %38 : vector<8x8xf32>
    %40 = math.exp %39 : vector<8x8xf32>
    %cst_15 = arith.constant dense<0.000000e+00> : vector<8xf32>
    %41 = vector.multi_reduction <add>, %40, %cst_15 [1] : vector<8x8xf32> to vector<8xf32>
    %42 = vector.shape_cast %41 : vector<8xf32> to vector<8x1xf32>
    %43 = tpu.reciprocal %42 {approx = true} : vector<8x1xf32> -> vector<8x1xf32>
    %44 = arith.mulf %42, %43 : vector<8x1xf32>
    %cst_16 = arith.constant 2.000000e+00 : f32
    %45 = vector.broadcast %cst_16 : f32 to vector<8x1xf32>
    %46 = arith.subf %45, %44 : vector<8x1xf32>
    %47 = arith.mulf %43, %46 : vector<8x1xf32>
    %48 = vector.broadcast %47 : vector<8x1xf32> to vector<8x8xf32>
    %49 = arith.mulf %40, %48 : vector<8x8xf32>
    %cst_17 = arith.constant dense<0.000000e+00> : vector<8x16xf32>
    %50 = tpu.matmul %49, %34, %cst_17 {dimension_numbers = #tpu.dot_dimension_numbers<[1], [0], [0], [1], [0, 0, 1, 1], [], []>} : vector<8x8xf32>, vector<8x16xf32>, vector<8x16xf32> -> vector<8x16xf32>
    %51 = tpu.concatenate %31, %50 in 1 : vector<8x16xf32>, vector<8x16xf32> -> vector<8x32xf32>
    %52 = vector.extract_strided_slice %10 {offsets = [8, 0], sizes = [8, 16], strides = [1, 1]} : vector<16x32xf32> to vector<8x16xf32>
    %53 = vector.extract_strided_slice %11 {offsets = [8, 0], sizes = [8, 16], strides = [1, 1]} : vector<16x32xf32> to vector<8x16xf32>
    %54 = vector.extract_strided_slice %12 {offsets = [8, 0], sizes = [8, 16], strides = [1, 1]} : vector<16x32xf32> to vector<8x16xf32>
    %cst_18 = arith.constant dense<0.000000e+00> : vector<8x8xf32>
    %55 = tpu.matmul %52, %53, %cst_18 {dimension_numbers = #tpu.dot_dimension_numbers<[1], [1], [0], [0], [0, 0, 1, 0], [], []>} : vector<8x16xf32>, vector<8x16xf32>, vector<8x8xf32> -> vector<8x8xf32>
    %cst_19 = arith.constant dense<0xFF800000> : vector<8xf32>
    %56 = vector.multi_reduction <maximumf>, %55, %cst_19 [1] : vector<8x8xf32> to vector<8xf32>
    %57 = vector.shape_cast %56 : vector<8xf32> to vector<8x1xf32>
    %58 = vector.broadcast %57 : vector<8x1xf32> to vector<8x8xf32>
    %59 = arith.subf %55, %58 : vector<8x8xf32>
    %60 = math.exp %59 : vector<8x8xf32>
    %cst_20 = arith.constant dense<0.000000e+00> : vector<8xf32>
    %61 = vector.multi_reduction <add>, %60, %cst_20 [1] : vector<8x8xf32> to vector<8xf32>
    %62 = vector.shape_cast %61 : vector<8xf32> to vector<8x1xf32>
    %63 = tpu.reciprocal %62 {approx = true} : vector<8x1xf32> -> vector<8x1xf32>
    %64 = arith.mulf %62, %63 : vector<8x1xf32>
    %cst_21 = arith.constant 2.000000e+00 : f32
    %65 = vector.broadcast %cst_21 : f32 to vector<8x1xf32>
    %66 = arith.subf %65, %64 : vector<8x1xf32>
    %67 = arith.mulf %63, %66 : vector<8x1xf32>
    %68 = vector.broadcast %67 : vector<8x1xf32> to vector<8x8xf32>
    %69 = arith.mulf %60, %68 : vector<8x8xf32>
    %cst_22 = arith.constant dense<0.000000e+00> : vector<8x16xf32>
    %70 = tpu.matmul %69, %54, %cst_22 {dimension_numbers = #tpu.dot_dimension_numbers<[1], [0], [0], [1], [0, 0, 1, 1], [], []>} : vector<8x8xf32>, vector<8x16xf32>, vector<8x16xf32> -> vector<8x16xf32>
    %71 = vector.extract_strided_slice %10 {offsets = [8, 16], sizes = [8, 16], strides = [1, 1]} : vector<16x32xf32> to vector<8x16xf32>
    %72 = vector.extract_strided_slice %11 {offsets = [8, 16], sizes = [8, 16], strides = [1, 1]} : vector<16x32xf32> to vector<8x16xf32>
    %73 = vector.extract_strided_slice %12 {offsets = [8, 16], sizes = [8, 16], strides = [1, 1]} : vector<16x32xf32> to vector<8x16xf32>
    %cst_23 = arith.constant dense<0.000000e+00> : vector<8x8xf32>
    %74 = tpu.matmul %71, %72, %cst_23 {dimension_numbers = #tpu.dot_dimension_numbers<[1], [1], [0], [0], [0, 0, 1, 0], [], []>} : vector<8x16xf32>, vector<8x16xf32>, vector<8x8xf32> -> vector<8x8xf32>
    %cst_24 = arith.constant dense<0xFF800000> : vector<8xf32>
    %75 = vector.multi_reduction <maximumf>, %74, %cst_24 [1] : vector<8x8xf32> to vector<8xf32>
    %76 = vector.shape_cast %75 : vector<8xf32> to vector<8x1xf32>
    %77 = vector.broadcast %76 : vector<8x1xf32> to vector<8x8xf32>
    %78 = arith.subf %74, %77 : vector<8x8xf32>
    %79 = math.exp %78 : vector<8x8xf32>
    %cst_25 = arith.constant dense<0.000000e+00> : vector<8xf32>
    %80 = vector.multi_reduction <add>, %79, %cst_25 [1] : vector<8x8xf32> to vector<8xf32>
    %81 = vector.shape_cast %80 : vector<8xf32> to vector<8x1xf32>
    %82 = tpu.reciprocal %81 {approx = true} : vector<8x1xf32> -> vector<8x1xf32>
    %83 = arith.mulf %81, %82 : vector<8x1xf32>
    %cst_26 = arith.constant 2.000000e+00 : f32
    %84 = vector.broadcast %cst_26 : f32 to vector<8x1xf32>
    %85 = arith.subf %84, %83 : vector<8x1xf32>
    %86 = arith.mulf %82, %85 : vector<8x1xf32>
    %87 = vector.broadcast %86 : vector<8x1xf32> to vector<8x8xf32>
    %88 = arith.mulf %79, %87 : vector<8x8xf32>
    %cst_27 = arith.constant dense<0.000000e+00> : vector<8x16xf32>
    %89 = tpu.matmul %88, %73, %cst_27 {dimension_numbers = #tpu.dot_dimension_numbers<[1], [0], [0], [1], [0, 0, 1, 1], [], []>} : vector<8x8xf32>, vector<8x16xf32>, vector<8x16xf32> -> vector<8x16xf32>
    %90 = tpu.concatenate %70, %89 in 1 : vector<8x16xf32>, vector<8x16xf32> -> vector<8x32xf32>
    %91 = tpu.concatenate %51, %90 in 0 : vector<8x32xf32>, vector<8x32xf32> -> vector<16x32xf32>
    %c0_28 = arith.constant 0 : index
    %c0_29 = arith.constant 0 : index
    %92 = vector.load %arg4[%c0_28, %c0_29] : memref<32x32xf32, #tpu.memory_space<vmem>>, vector<32x32xf32>
    %cst_30 = arith.constant dense<0.000000e+00> : vector<16x32xf32>
    %93 = tpu.matmul %91, %92, %cst_30 {dimension_numbers = #tpu.dot_dimension_numbers<[1], [1], [0], [0], [0, 0, 1, 0], [], []>} : vector<16x32xf32>, vector<32x32xf32>, vector<16x32xf32> -> vector<16x32xf32>
    %c0_31 = arith.constant 0 : index
    %c0_32 = arith.constant 0 : index
    %94 = vector.load %arg5[%c0_31, %c0_32] : memref<1x32xf32, #tpu.memory_space<vmem>>, vector<1x32xf32>
    %95 = vector.broadcast %94 : vector<1x32xf32> to vector<16x32xf32>
    %96 = arith.addf %93, %95 : vector<16x32xf32>
    %c0_33 = arith.constant 0 : index
    %c0_34 = arith.constant 0 : index
    %97 = vector.load %arg6[%c0_33, %c0_34] : memref<16x32xf32, #tpu.memory_space<vmem>>, vector<16x32xf32>
    tpu.vector_store %arg6[%c0_33, %c0_34], %96 {strides = array<i32>} : memref<16x32xf32, #tpu.memory_space<vmem>>, vector<16x32xf32>,
    return
  }
}

</mosaic_0001>

<llo_original>
// kernel: cross_attention.1
$region0: #{cross_attention.1}
  #allocation0 [shape = 'u32[]', space=smem, size = 0x4, offset = 0x4, fixed_abs, tag = 'smem constant byte address 0x4 - core index']
  #allocation1 [shape = 'u32[72,128]{1,0:T(1,128)}', space=vmem, size = 0x9000, scoped, tag = 'internal scratch']
  %s0 = inlined_call_operand.vmem [shape: f32[16,16], index: 0, kind: input, shape index: {}]
  %s1 = inlined_call_operand.vmem [shape: f32[16,16], index: 1, kind: input, shape index: {}]
  %s2 = inlined_call_operand.vmem [shape: f32[96,32], index: 2, kind: input, shape index: {}]
  %s3 = inlined_call_operand.vmem [shape: f32[1,96], index: 3, kind: input, shape index: {}]
  %s4 = inlined_call_operand.vmem [shape: f32[32,32], index: 4, kind: input, shape index: {}]
  %s5 = inlined_call_operand.vmem [shape: f32[1,32], index: 5, kind: input, shape index: {}]
  %s6 = inlined_call_operand.vmem [shape: f32[16,32], index: 6, kind: output, shape index: {}]
  %s7 = sld [smem:[#allocation0]]
  $region34: #{cross_attention.1} parent=0
    _
  %s9 = ssub.s32 1, %s7
  %s10 = scalar_select 0, %s9, %s7
  // Predicated region
  $region2: #{cross_attention.1} parent=0 // pred_check
    _
  $region3: #{cross_attention.1} parent=0 // pred_check_branch
    %12 = sbr.rel (0) target = $region5
  $region4: #{cross_attention.1} parent=0 // pred_region
    _
  $region5: #{cross_attention.1} parent=0 // pred_fallthru
    _
  // Predicated region
  $region6: #{cross_attention.1} parent=0 // pred_check
    _
  $region7: #{cross_attention.1} parent=0 // pred_check_branch
    %14 = sbr.rel (0) target = $region9
  $region8: #{cross_attention.1} parent=0 // pred_region
    _
  $region9: #{cross_attention.1} parent=0 // pred_fallthru
    _
  // Predicated region
  $region10: #{cross_attention.1} parent=0 // pred_check
    _
  $region11: #{cross_attention.1} parent=0 // pred_check_branch
    %16 = sbr.rel (0) target = $region13
  $region12: #{cross_attention.1} parent=0 // pred_region
    _
  $region13: #{cross_attention.1} parent=0 // pred_fallthru
    _
  // Predicated region
  $region14: #{cross_attention.1} parent=0 // pred_check
    _
  $region15: #{cross_attention.1} parent=0 // pred_check_branch
    %18 = sbr.rel (0) target = $region17
  $region16: #{cross_attention.1} parent=0 // pred_region
    _
  $region17: #{cross_attention.1} parent=0 // pred_fallthru
    _
  // Predicated region
  $region18: #{cross_attention.1} parent=0 // pred_check
    _
  $region19: #{cross_attention.1} parent=0 // pred_check_branch
    %20 = sbr.rel (0) target = $region21
  $region20: #{cross_attention.1} parent=0 // pred_region
    _
  $region21: #{cross_attention.1} parent=0 // pred_fallthru
    _
  // Predicated region
  $region22: #{cross_attention.1} parent=0 // pred_check
    _
  $region23: #{cross_attention.1} parent=0 // pred_check_branch
    %22 = sbr.rel (0) target = $region25
  $region24: #{cross_attention.1} parent=0 // pred_region
    _
  $region25: #{cross_attention.1} parent=0 // pred_fallthru
    _
  %v23 = vld [vmem:[%s0] sm:$0xff]
  %v24 = vld [vmem:[%s0 + $0x8] sm:$0xff]
  %v25 = vld [vmem:[%s1] sm:$0xff]
  %v26 = vld [vmem:[%s1 + $0x8] sm:$0xff]
  %29 = vrot.lane.b32.xlu0 %v25, 16
  %v30 = vpop.permute.xlu0 %29
  %31 = vrot.lane.b32.xlu0 %v26, 16
  %v32 = vpop.permute.xlu0 %31
  %vm35 = vcmask 130048
  %v36 = vsel %vm35, %v23, %v30
  %v37 = vsel %vm35, %v24, %v32
  %v38 = vld [vmem:[%s2] sm:$0xff]
  %v39 = vld [vmem:[%s2 + $0x8] sm:$0xff]
  %v40 = vld [vmem:[%s2 + $0x10] sm:$0xff]
  %v41 = vld [vmem:[%s2 + $0x18] sm:$0xff]
  %v42 = vld [vmem:[%s2 + $0x20] sm:$0xff]
  %v43 = vld [vmem:[%s2 + $0x28] sm:$0xff]
  %v44 = vld [vmem:[%s2 + $0x30] sm:$0xff]
  %v45 = vld [vmem:[%s2 + $0x38] sm:$0xff]
  %v46 = vld [vmem:[%s2 + $0x40] sm:$0xff]
  %v47 = vld [vmem:[%s2 + $0x48] sm:$0xff]
  %v48 = vld [vmem:[%s2 + $0x50] sm:$0xff]
  %v49 = vld [vmem:[%s2 + $0x58] sm:$0xff]
  %v50 = vld [vmem:[%s3] sm:$0x1]
  %v52 = vperm.slane %v50, 0
  %vm54 = vcmask 261120
  %v56 = vsel %vm54, %v36, 0
  %v59 = vsel %vm54, %v37, 0
  %v62 = vsel %vm54, %v38, 0
  %v65 = vsel %vm54, %v39, 0
  %v68 = vsel %vm54, %v40, 0
  %v71 = vsel %vm54, %v41, 0
  %v74 = vsel %vm54, %v42, 0
  %v77 = vsel %vm54, %v43, 0
  %v80 = vsel %vm54, %v44, 0
  %v83 = vsel %vm54, %v45, 0
  %v86 = vsel %vm54, %v46, 0
  %v89 = vsel %vm54, %v47, 0
  %v92 = vsel %vm54, %v48, 0
  %v95 = vsel %vm54, %v49, 0
  %97 = vmatpush.xpose.msra.mxu0 0.0
  %98 = vmatpush.xpose.msra.mxu0 0.0
  %99 = vmatpush.xpose.msra.mxu0 0.0
  %100 = vmatpush.xpose.msra.mxu0 0.0
  %101 = vmatpush.xpose.msra.mxu0 %v95
  %102 = vmatpush.xpose.msra.mxu0 %v92
  %103 = vmatpush.xpose.msra.mxu0 %v89
  %104 = vmatpush.xpose.msra.mxu0 %v86
  %105 = vmatpush.xpose.msra.mxu0 %v83
  %106 = vmatpush.xpose.msra.mxu0 %v80
  %107 = vmatpush.xpose.msra.mxu0 %v77
  %108 = vmatpush.xpose.msra.mxu0 %v74
  %109 = vmatpush.xpose.msra.mxu0 %v71
  %110 = vmatpush.xpose.msra.mxu0 %v68
  %111 = vmatpush.xpose.msra.mxu0 %v65
  %112 = vmatpush.xpose.msra.mxu0 %v62
  %113 = vmatmul.f32.gmra.mxu0 %v56
  %v114 = vpop.f32.mrf.mxu0
  %v115 = vadd.f32 %v52, %v114
  %116 = vmatmul.f32.gmra.mxu0 %v59
  %v117 = vpop.f32.mrf.mxu0
  %v118 = vadd.f32 %v52, %v117
  %119 = vdwg.mxu0
  %v120 = vmul.f32 %v115, 0.25
  %v121 = vmul.f32 %v118, 0.25
  %123 = vrot.lane.b32.xlu0 %v115, 96
  %v124 = vpop.permute.xlu0 %123
  %v126 = vsel %vm35, %v120, 0
  %v128 = vsel %vm35, %v124, 0
  %130 = vmatpush.xpose.msra.mxu0 0.0
  %131 = vmatpush.xpose.msra.mxu0 0.0
  %132 = vmatpush.xpose.msra.mxu0 0.0
  %133 = vmatpush.xpose.msra.mxu0 0.0
  %134 = vmatpush.xpose.msra.mxu0 0.0
  %135 = vmatpush.xpose.msra.mxu0 0.0
  %136 = vmatpush.xpose.msra.mxu0 0.0
  %137 = vmatpush.xpose.msra.mxu0 0.0
  %138 = vmatpush.xpose.msra.mxu0 0.0
  %139 = vmatpush.xpose.msra.mxu0 0.0
  %140 = vmatpush.xpose.msra.mxu0 0.0
  %141 = vmatpush.xpose.msra.mxu0 0.0
  %142 = vmatpush.xpose.msra.mxu0 0.0
  %143 = vmatpush.xpose.msra.mxu0 0.0
  %144 = vmatpush.xpose.msra.mxu0 0.0
  %145 = vmatpush.xpose.msra.mxu0 %v128
  %146 = vmatmul.f32.gmra.mxu0 %v126
  %v147 = vpop.f32.mrf.mxu0
  %v148 = vadd.f32 0.0, %v147
  %149 = vdwg.mxu0
  %vm150 = vcmask 64512
  %v151 = vsel %vm150, %v148, -inf
  %152 = vmax.xlane.f32.xlu0 %v151
  %v153 = vpop.xlane.xlu0 %152
  %v154 = vsub.f32 %v148, %v153
  %v155 = vmul.f32 %v154, 1.442695
  %v156 = vpow.pop %v155
  %v157 = vsel %vm150, %v156, 0.0
  %158 = vadd.xlane.f32.xlu0 %v157
  %v159 = vpop.xlane.xlu0 %158
  %v160 = vrcp.pop %v159
  %v161 = vmul.f32 %v159, %v160
  %v162 = vsub.f32 2.0, %v161
  %v163 = vmul.f32 %v160, %v162
  %v164 = vmul.f32 %v156, %v163
  %165 = vrot.lane.b32.xlu0 %v115, 64
  %v166 = vpop.permute.xlu0 %165
  %v169 = vsel %vm150, %v164, 0
  %171 = vmatpush.msra.mxu0 0.0
  %172 = vmatpush.msra.mxu0 0.0
  %173 = vmatpush.msra.mxu0 0.0
  %174 = vmatpush.msra.mxu0 0.0
  %175 = vmatpush.msra.mxu0 0.0
  %176 = vmatpush.msra.mxu0 0.0
  %177 = vmatpush.msra.mxu0 0.0
  %178 = vmatpush.msra.mxu0 0.0
  %179 = vmatpush.msra.mxu0 0.0
  %180 = vmatpush.msra.mxu0 0.0
  %181 = vmatpush.msra.mxu0 0.0
  %182 = vmatpush.msra.mxu0 0.0
  %183 = vmatpush.msra.mxu0 0.0
  %184 = vmatpush.msra.mxu0 0.0
  %185 = vmatpush.msra.mxu0 0.0
  %186 = vmatpush.msra.mxu0 %v166
  %187 = vmatmul.f32.gmra.mxu0 %v169
  %v188 = vpop.f32.mrf.mxu0
  %v189 = vadd.f32 0.0, %v188
  %190 = vdwg.mxu0
  %191 = vrot.lane.b32.xlu0 %v120, 112
  %v192 = vpop.permute.xlu0 %191
  %193 = vrot.lane.b32.xlu0 %v115, 80
  %v194 = vpop.permute.xlu0 %193
  %v195 = vsel %vm35, %v192, 0
  %v197 = vsel %vm35, %v194, 0
  %199 = vmatpush.xpose.msra.mxu0 0.0
  %200 = vmatpush.xpose.msra.mxu0 0.0
  %201 = vmatpush.xpose.msra.mxu0 0.0
  %202 = vmatpush.xpose.msra.mxu0 0.0
  %203 = vmatpush.xpose.msra.mxu0 0.0
  %204 = vmatpush.xpose.msra.mxu0 0.0
  %205 = vmatpush.xpose.msra.mxu0 0.0
  %206 = vmatpush.xpose.msra.mxu0 0.0
  %207 = vmatpush.xpose.msra.mxu0 0.0
  %208 = vmatpush.xpose.msra.mxu0 0.0
  %209 = vmatpush.xpose.msra.mxu0 0.0
  %210 = vmatpush.xpose.msra.mxu0 0.0
  %211 = vmatpush.xpose.msra.mxu0 0.0
  %212 = vmatpush.xpose.msra.mxu0 0.0
  %213 = vmatpush.xpose.msra.mxu0 0.0
  %214 = vmatpush.xpose.msra.mxu0 %v197
  %215 = vmatmul.f32.gmra.mxu0 %v195
  %v216 = vpop.f32.mrf.mxu0
  %v217 = vadd.f32 0.0, %v216
  %218 = vdwg.mxu0
  %v219 = vsel %vm150, %v217, -inf
  %220 = vmax.xlane.f32.xlu0 %v219
  %v221 = vpop.xlane.xlu0 %220
  %v222 = vsub.f32 %v217, %v221
  %v223 = vmul.f32 %v222, 1.442695
  %v224 = vpow.pop %v223
  %v225 = vsel %vm150, %v224, 0.0
  %226 = vadd.xlane.f32.xlu0 %v225
  %v227 = vpop.xlane.xlu0 %226
  %v228 = vrcp.pop %v227
  %v229 = vmul.f32 %v227, %v228
  %v230 = vsub.f32 2.0, %v229
  %v231 = vmul.f32 %v228, %v230
  %v232 = vmul.f32 %v224, %v231
  %233 = vrot.lane.b32.xlu0 %v115, 48
  %v234 = vpop.permute.xlu0 %233
  %v237 = vsel %vm150, %v232, 0
  %239 = vmatpush.msra.mxu0 0.0
  %240 = vmatpush.msra.mxu0 0.0
  %241 = vmatpush.msra.mxu0 0.0
  %242 = vmatpush.msra.mxu0 0.0
  %243 = vmatpush.msra.mxu0 0.0
  %244 = vmatpush.msra.mxu0 0.0
  %245 = vmatpush.msra.mxu0 0.0
  %246 = vmatpush.msra.mxu0 0.0
  %247 = vmatpush.msra.mxu0 0.0
  %248 = vmatpush.msra.mxu0 0.0
  %249 = vmatpush.msra.mxu0 0.0
  %250 = vmatpush.msra.mxu0 0.0
  %251 = vmatpush.msra.mxu0 0.0
  %252 = vmatpush.msra.mxu0 0.0
  %253 = vmatpush.msra.mxu0 0.0
  %254 = vmatpush.msra.mxu0 %v234
  %255 = vmatmul.f32.gmra.mxu0 %v237
  %v256 = vpop.f32.mrf.mxu0
  %v257 = vadd.f32 0.0, %v256
  %258 = vdwg.mxu0
  %260 = vrot.lane.b32.xlu0 %v257, 16
  %v261 = vpop.permute.xlu0 %260
  %v263 = vsel %vm35, %v189, %v261
  %265 = vrot.lane.b32.xlu0 %v118, 96
  %v266 = vpop.permute.xlu0 %265
  %v268 = vsel %vm35, %v121, 0
  %v270 = vsel %vm35, %v266, 0
  %272 = vmatpush.xpose.msra.mxu0 0.0
  %273 = vmatpush.xpose.msra.mxu0 0.0
  %274 = vmatpush.xpose.msra.mxu0 0.0
  %275 = vmatpush.xpose.msra.mxu0 0.0
  %276 = vmatpush.xpose.msra.mxu0 0.0
  %277 = vmatpush.xpose.msra.mxu0 0.0
  %278 = vmatpush.xpose.msra.mxu0 0.0
  %279 = vmatpush.xpose.msra.mxu0 0.0
  %280 = vmatpush.xpose.msra.mxu0 0.0
  %281 = vmatpush.xpose.msra.mxu0 0.0
  %282 = vmatpush.xpose.msra.mxu0 0.0
  %283 = vmatpush.xpose.msra.mxu0 0.0
  %284 = vmatpush.xpose.msra.mxu0 0.0
  %285 = vmatpush.xpose.msra.mxu0 0.0
  %286 = vmatpush.xpose.msra.mxu0 0.0
  %287 = vmatpush.xpose.msra.mxu0 %v270
  %288 = vmatmul.f32.gmra.mxu0 %v268
  %v289 = vpop.f32.mrf.mxu0
  %v290 = vadd.f32 0.0, %v289
  %291 = vdwg.mxu0
  %v292 = vsel %vm150, %v290, -inf
  %293 = vmax.xlane.f32.xlu0 %v292
  %v294 = vpop.xlane.xlu0 %293
  %v295 = vsub.f32 %v290, %v294
  %v296 = vmul.f32 %v295, 1.442695
  %v297 = vpow.pop %v296
  %v298 = vsel %vm150, %v297, 0.0
  %299 = vadd.xlane.f32.xlu0 %v298
  %v300 = vpop.xlane.xlu0 %299
  %v301 = vrcp.pop %v300
  %v302 = vmul.f32 %v300, %v301
  %v303 = vsub.f32 2.0, %v302
  %v304 = vmul.f32 %v301, %v303
  %v305 = vmul.f32 %v297, %v304
  %306 = vrot.lane.b32.xlu0 %v118, 64
  %v307 = vpop.permute.xlu0 %306
  %v310 = vsel %vm150, %v305, 0
  %312 = vmatpush.msra.mxu0 0.0
  %313 = vmatpush.msra.mxu0 0.0
  %314 = vmatpush.msra.mxu0 0.0
  %315 = vmatpush.msra.mxu0 0.0
  %316 = vmatpush.msra.mxu0 0.0
  %317 = vmatpush.msra.mxu0 0.0
  %318 = vmatpush.msra.mxu0 0.0
  %319 = vmatpush.msra.mxu0 0.0
  %320 = vmatpush.msra.mxu0 0.0
  %321 = vmatpush.msra.mxu0 0.0
  %322 = vmatpush.msra.mxu0 0.0
  %323 = vmatpush.msra.mxu0 0.0
  %324 = vmatpush.msra.mxu0 0.0
  %325 = vmatpush.msra.mxu0 0.0
  %326 = vmatpush.msra.mxu0 0.0
  %327 = vmatpush.msra.mxu0 %v307
  %328 = vmatmul.f32.gmra.mxu0 %v310
  %v329 = vpop.f32.mrf.mxu0
  %v330 = vadd.f32 0.0, %v329
  %331 = vdwg.mxu0
  %332 = vrot.lane.b32.xlu0 %v121, 112
  %v333 = vpop.permute.xlu0 %332
  %334 = vrot.lane.b32.xlu0 %v118, 80
  %v335 = vpop.permute.xlu0 %334
  %v336 = vsel %vm35, %v333, 0
  %v338 = vsel %vm35, %v335, 0
  %340 = vmatpush.xpose.msra.mxu0 0.0
  %341 = vmatpush.xpose.msra.mxu0 0.0
  %342 = vmatpush.xpose.msra.mxu0 0.0
  %343 = vmatpush.xpose.msra.mxu0 0.0
  %344 = vmatpush.xpose.msra.mxu0 0.0
  %345 = vmatpush.xpose.msra.mxu0 0.0
  %346 = vmatpush.xpose.msra.mxu0 0.0
  %347 = vmatpush.xpose.msra.mxu0 0.0
  %348 = vmatpush.xpose.msra.mxu0 0.0
  %349 = vmatpush.xpose.msra.mxu0 0.0
  %350 = vmatpush.xpose.msra.mxu0 0.0
  %351 = vmatpush.xpose.msra.mxu0 0.0
  %352 = vmatpush.xpose.msra.mxu0 0.0
  %353 = vmatpush.xpose.msra.mxu0 0.0
  %354 = vmatpush.xpose.msra.mxu0 0.0
  %355 = vmatpush.xpose.msra.mxu0 %v338
  %356 = vmatmul.f32.gmra.mxu0 %v336
  %v357 = vpop.f32.mrf.mxu0
  %v358 = vadd.f32 0.0, %v357
  %359 = vdwg.mxu0
  %v360 = vsel %vm150, %v358, -inf
  %361 = vmax.xlane.f32.xlu0 %v360
  %v362 = vpop.xlane.xlu0 %361
  %v363 = vsub.f32 %v358, %v362
  %v364 = vmul.f32 %v363, 1.442695
  %v365 = vpow.pop %v364
  %v366 = vsel %vm150, %v365, 0.0
  %367 = vadd.xlane.f32.xlu0 %v366
  %v368 = vpop.xlane.xlu0 %367
  %v369 = vrcp.pop %v368
  %v370 = vmul.f32 %v368, %v369
  %v371 = vsub.f32 2.0, %v370
  %v372 = vmul.f32 %v369, %v371
  %v373 = vmul.f32 %v365, %v372
  %374 = vrot.lane.b32.xlu0 %v118, 48
  %v375 = vpop.permute.xlu0 %374
  %v378 = vsel %vm150, %v373, 0
  %380 = vmatpush.msra.mxu0 0.0
  %381 = vmatpush.msra.mxu0 0.0
  %382 = vmatpush.msra.mxu0 0.0
  %383 = vmatpush.msra.mxu0 0.0
  %384 = vmatpush.msra.mxu0 0.0
  %385 = vmatpush.msra.mxu0 0.0
  %386 = vmatpush.msra.mxu0 0.0
  %387 = vmatpush.msra.mxu0 0.0
  %388 = vmatpush.msra.mxu0 0.0
  %389 = vmatpush.msra.mxu0 0.0
  %390 = vmatpush.msra.mxu0 0.0
  %391 = vmatpush.msra.mxu0 0.0
  %392 = vmatpush.msra.mxu0 0.0
  %393 = vmatpush.msra.mxu0 0.0
  %394 = vmatpush.msra.mxu0 0.0
  %395 = vmatpush.msra.mxu0 %v375
  %396 = vmatmul.f32.gmra.mxu0 %v378
  %v397 = vpop.f32.mrf.mxu0
  %v398 = vadd.f32 0.0, %v397
  %399 = vdwg.mxu0
  %401 = vrot.lane.b32.xlu0 %v398, 16
  %v402 = vpop.permute.xlu0 %401
  %v404 = vsel %vm35, %v330, %v402
  %v405 = vld [vmem:[%s4] sm:$0xff]
  %v406 = vld [vmem:[%s4 + $0x8] sm:$0xff]
  %v407 = vld [vmem:[%s4 + $0x10] sm:$0xff]
  %v408 = vld [vmem:[%s4 + $0x18] sm:$0xff]
  %v409 = vld [vmem:[%s5] sm:$0x1]
  %v411 = vperm.slane %v409, 0
  %v414 = vsel %vm54, %v263, 0
  %v417 = vsel %vm54, %v404, 0
  %v420 = vsel %vm54, %v405, 0
  %v423 = vsel %vm54, %v406, 0
  %v426 = vsel %vm54, %v407, 0
  %v429 = vsel %vm54, %v408, 0
  %431 = vmatpush.xpose.msra.mxu0 0.0
  %432 = vmatpush.xpose.msra.mxu0 0.0
  %433 = vmatpush.xpose.msra.mxu0 0.0
  %434 = vmatpush.xpose.msra.mxu0 0.0
  %435 = vmatpush.xpose.msra.mxu0 0.0
  %436 = vmatpush.xpose.msra.mxu0 0.0
  %437 = vmatpush.xpose.msra.mxu0 0.0
  %438 = vmatpush.xpose.msra.mxu0 0.0
  %439 = vmatpush.xpose.msra.mxu0 0.0
  %440 = vmatpush.xpose.msra.mxu0 0.0
  %441 = vmatpush.xpose.msra.mxu0 0.0
  %442 = vmatpush.xpose.msra.mxu0 0.0
  %443 = vmatpush.xpose.msra.mxu0 %v429
  %444 = vmatpush.xpose.msra.mxu0 %v426
  %445 = vmatpush.xpose.msra.mxu0 %v423
  %446 = vmatpush.xpose.msra.mxu0 %v420
  %447 = vmatmul.f32.gmra.mxu0 %v414
  %v448 = vpop.f32.mrf.mxu0
  %v449 = vadd.f32 %v411, %v448
  %450 = vmatmul.f32.gmra.mxu0 %v417
  %v451 = vpop.f32.mrf.mxu0
  %v452 = vadd.f32 %v411, %v451
  %453 = vdwg.mxu0
  %454 = vst.msk [vmem:[%s6] sm:$0xff] %vm54, %v449
  %455 = vst.msk [vmem:[%s6 + $0x8] sm:$0xff] %vm54, %v452
  // Predicated region
  $region26: #{cross_attention.1} parent=0 // pred_check
    _
  $region27: #{cross_attention.1} parent=0 // pred_check_branch
    %457 = sbr.rel (0) target = $region29
  $region28: #{cross_attention.1} parent=0 // pred_region
    _
  $region29: #{cross_attention.1} parent=0 // pred_fallthru
    _
  // Predicated region
  $region30: #{cross_attention.1} parent=0 // pred_check
    _
  $region31: #{cross_attention.1} parent=0 // pred_check_branch
    %459 = sbr.rel (0) target = $region33
  $region32: #{cross_attention.1} parent=0 // pred_region
    _
  $region33: #{cross_attention.1} parent=0 // pred_fallthru
    _

</llo_original>
